<compile_context>
chip_gen: v7x
topology: tpu7x:2x2x1
jax: 0.10.0
libtpu: 0.0.40
codegen_flags: <defaults>
</compile_context>

<pallas_src>
import functools

import numpy as np

import jax
import jax.numpy as jnp
from jax.experimental import pallas as pl
from jax.experimental.pallas import tpu as pltpu


def empty_layer_forward(x):
    """EmptyLayer.forward(x): the reference body is `pass` -> returns None."""
    return None


def _round_up(x, m):
    return (x + m - 1) // m * m


def _yolo_decode_kernel(pred_ref, meta_ref, out_ref, *, width, tile_hw):
    """Decode one (batch, spatial-tile) block.

    pred_ref / out_ref: (A*D, tile_hw) with all anchors' channels on the
    sublane axis and flattened H*W positions on the lane axis.
    meta_ref: (A*D, 4) per-row constants [use_exp, add_gx, add_gy, scale].
    """
    t_idx = pl.program_id(1)                       # spatial tile index

    p = pred_ref[...].astype(jnp.float32)          # (AD, T)
    meta = meta_ref[...]                           # (AD, 4) tiny table
    use_exp = meta[:, 0:1] > 0.5                   # tw/th rows
    add_gx = meta[:, 1:2]                          # tx rows
    add_gy = meta[:, 2:3]                          # ty rows
    scale = meta[:, 3:4]                           # stride / raw anchor / 1

    # Flattened spatial index of each lane (exact small integers in f32).
    lane = jax.lax.broadcasted_iota(jnp.int32, (1, tile_hw), 1)
    lin = (lane + t_idx * tile_hw).astype(jnp.float32)   # h*W + w
    wf = jnp.float32(width)
    gy = jnp.floor(lin * jnp.float32(1.0 / width))
    rem = lin - gy * wf                            # exact (integer-valued f32)
    gy = jnp.where(rem < 0.0, gy - 1.0, gy)        # off-by-one correction
    gy = jnp.where(rem >= wf, gy + 1.0, gy)
    gx = lin - gy * wf

    # Full-block transcendentals + per-row blend.  The kernel is HBM-bound, so
    # the extra EUP work is free; the select avoids inf*0 NaNs.
    sig = jax.nn.sigmoid(p)
    ex = jnp.exp(p)
    val = jnp.where(use_exp, ex, sig)
    val = val + add_gx * gx + add_gy * gy

    # Single unmasked full-width store of the whole block.
    out_ref[...] = val * scale


def yolo_layer_forward(x, anchors, num_classes, image_size, *,
                       lane_tile=8192, to_torch_layout=False):
    """Equivalent of YOLOLayer.forward((x, None)) (inference branch).

    Returns channel-major (B, A, D, H, W) by default (no relayout); set
    to_torch_layout=True for the torch (B, A*H*W, D) order (do this once over
    the concatenation of all heads in a real model).
    """
    B, Cin, H, W = x.shape
    A = len(anchors)
    D = num_classes + 5
    AD = A * D
    assert Cin == AD, f"expected {AD} channels, got {Cin}"
    assert lane_tile % 128 == 0

    img_w, img_h = int(image_size[0]), int(image_size[1])
    stride_w = img_w / W
    stride_h = img_h / H
    HW = H * W
    in_bytes = int(x.dtype.itemsize)

    # Channel-major, lane-dense layout: free reshape of NCHW, anchors folded in.
    pred = x.reshape(B, AD, HW)

    # ---- spatial tiling: full-extent block when possible, minimal padding ----
    n_sp = max(1, -(-HW // lane_tile))
    if B == 1 and n_sp == 1 and HW >= 256:
        n_sp = 2                       # keep both v7x TensorCores busy

    def tile_for(n):
        return HW if n == 1 else _round_up(-(-HW // n), 128)

    tile_hw = tile_for(n_sp)

    # Cap double-buffered working set (in + out blocks) well under v7x's 64 MiB.
    def working_set(t):
        return 2 * AD * t * (in_bytes + 4)

    VMEM_BUDGET = 40 * 1024 * 1024
    while working_set(tile_hw) > VMEM_BUDGET and tile_hw > 128:
        n_sp += 1
        tile_hw = tile_for(n_sp)

    hw_pad = n_sp * tile_hw
    if hw_pad != HW:                   # only a minimal tail pad (usually zero)
        pred = jnp.pad(pred, ((0, 0), (0, 0), (0, hw_pad - HW)))

    # ---- per-row compile-time metadata (tiny aux, AD*16 bytes) ----
    d = np.arange(AD) % D
    use_exp = ((d == 2) | (d == 3)).astype(np.float32)
    add_gx = (d == 0).astype(np.float32)
    add_gy = (d == 1).astype(np.float32)
    scale = np.ones(AD, np.float32)
    scale[d == 0] = stride_w
    scale[d == 1] = stride_h
    for ai in range(A):
        scale[ai * D + 2] = float(anchors[ai][0])   # (aw/sw)*sw folds to aw
        scale[ai * D + 3] = float(anchors[ai][1])
    row_meta = jnp.asarray(np.stack([use_exp, add_gx, add_gy, scale], axis=1))

    kernel = functools.partial(_yolo_decode_kernel, width=W, tile_hw=tile_hw)

    n_elems = B * AD * hw_pad
    vmem_limit = int(min(64 << 20, max(16 << 20, working_set(tile_hw) + (4 << 20))))

    decoded = pl.pallas_call(
        kernel,
        out_shape=jax.ShapeDtypeStruct((B, AD, hw_pad), jnp.float32),
        grid=(B, n_sp),
        in_specs=[
            pl.BlockSpec((None, AD, tile_hw), lambda b, t: (b, 0, t)),
            pl.BlockSpec((AD, 4), lambda b, t: (0, 0)),
        ],
        out_specs=pl.BlockSpec((None, AD, tile_hw), lambda b, t: (b, 0, t)),
        compiler_params=pltpu.CompilerParams(
            dimension_semantics=("parallel", "parallel"),
            vmem_limit_bytes=vmem_limit),
        cost_estimate=pl.CostEstimate(
            flops=5 * n_elems,
            transcendentals=2 * n_elems,
            bytes_accessed=n_elems * (in_bytes + 4)),
    )(pred, row_meta)

    if hw_pad != HW:
        decoded = decoded[..., :HW]

    decoded = decoded.reshape(B, A, D, H, W)   # free reinterpretation

    if to_torch_layout:
        # Optional, lane-hostile relayout -- do it once over all heads.
        output = jnp.transpose(decoded, (0, 1, 3, 4, 2)).reshape(B, A * H * W, D)
    else:
        output = decoded

    # target is None branch: all losses are zeros of shape (1,)
    zero = jnp.zeros((1,), jnp.float32)
    return output, zero, zero, zero, zero, zero


def _reference_jax(x, anchors, num_classes, image_size):
    """Pure-JAX reimplementation of the torch __detect() path for verification."""
    B, Cin, H, W = x.shape
    A = len(anchors)
    D = num_classes + 5
    img_w, img_h = int(image_size[0]), int(image_size[1])
    stride_h = img_h / H
    stride_w = img_w / W
    scale_anchors = jnp.asarray(
        [(aw / stride_w, ah / stride_h) for (aw, ah) in anchors], jnp.float32)

    pred = jnp.transpose(x.reshape(B, A, D, H, W),
                         (0, 1, 3, 4, 2)).astype(jnp.float32)
    cx = jax.nn.sigmoid(pred[..., 0])
    cy = jax.nn.sigmoid(pred[..., 1])
    w = pred[..., 2]
    h = pred[..., 3]
    conf = jax.nn.sigmoid(pred[..., 4])
    cls = jax.nn.sigmoid(pred[..., 5:])

    gx = jnp.arange(W, dtype=jnp.float32)[None, None, None, :]
    gy = jnp.arange(H, dtype=jnp.float32)[None, None, :, None]
    aw = scale_anchors[:, 0][None, :, None, None]
    ah = scale_anchors[:, 1][None, :, None, None]

    boxes = jnp.stack([cx + gx, cy + gy, jnp.exp(w) * aw, jnp.exp(h) * ah],
                      axis=-1)
    scale = jnp.asarray([stride_w, stride_h, stride_w, stride_h], jnp.float32)
    out = jnp.concatenate([
        boxes.reshape(B, -1, 4) * scale,
        conf.reshape(B, -1, 1),
        cls.reshape(B, -1, num_classes),
    ], axis=-1)
    return out


if __name__ == "__main__":
    # Small, deterministic configuration: 3 anchors, 3 classes -> 24 channels.
    anchors = [(10.0, 13.0), (16.0, 30.0), (33.0, 23.0)]
    num_classes = 3
    image_size = (128, 128)
    B, H, W = 2, 16, 16
    A = len(anchors)
    D = num_classes + 5
    Cin = A * D

    key = jax.random.PRNGKey(0)
    x = jax.random.normal(key, (B, Cin, H, W), dtype=jnp.float32)

    # EmptyLayer semantics: forward is a no-op returning None.
    assert empty_layer_forward(x) is None

    ref = _reference_jax(x, anchors, num_classes, image_size)

    # Fast path: channel-major output, no post-kernel relayout.
    out_cm, total_loss, loss_xy, loss_wh, loss_conf, loss_cls = (
        yolo_layer_forward(x, anchors, num_classes, image_size))
    out_cm = jax.block_until_ready(out_cm)
    assert out_cm.shape == (B, A, D, H, W), out_cm.shape
    out_cm_as_torch = jnp.transpose(out_cm, (0, 1, 3, 4, 2)).reshape(B, A * H * W, D)
    assert jnp.allclose(out_cm_as_torch, ref, atol=1e-5, rtol=1e-5), "cm mismatch"

    # Parity path: torch (B, A*H*W, D) layout (single relayout outside kernel).
    out_t, *_ = yolo_layer_forward(x, anchors, num_classes, image_size,
                                   to_torch_layout=True)
    out_t = jax.block_until_ready(out_t)
    assert out_t.shape == (B, A * H * W, D), out_t.shape
    assert jnp.allclose(out_t, ref, atol=1e-5, rtol=1e-5), "torch-layout mismatch"
    assert total_loss.shape == (1,) and float(total_loss[0]) == 0.0

    # Exercise the multi-tile path (B=1 forces a 2-way spatial split, tile=128).
    x1 = jax.random.normal(jax.random.PRNGKey(1), (1, Cin, H, W), jnp.float32)
    out1, *_ = yolo_layer_forward(x1, anchors, num_classes, image_size,
                                  lane_tile=128)
    out1 = jax.block_until_ready(out1)
    ref1 = _reference_jax(x1, anchors, num_classes, image_size)
    out1_torch = jnp.transpose(out1, (0, 1, 3, 4, 2)).reshape(1, A * H * W, D)
    assert jnp.allclose(out1_torch, ref1, atol=1e-5, rtol=1e-5), "tiled mismatch"

    print("KERNEL_OK")
</pallas_src>

<mosaic_0001>
module attributes {stable_mosaic.version = 11 : i64} {
  func.func @_yolo_decode_kernel(%arg0: i32, %arg1: i32, %arg2: memref<1x24x256xf32, #tpu.memory_space<vmem>>, %arg3: memref<24x4xf32, #tpu.memory_space<vmem>>, %arg4: memref<1x24x256xf32, #tpu.memory_space<vmem>>) attributes {dimension_semantics = [#tpu.dimension_semantics<parallel>, #tpu.dimension_semantics<parallel>], iteration_bounds = array<i64: 2, 1>, scalar_prefetch = 0 : i64, scratch_operands = 0 : i64, tpu.core_type = #tpu.core_type<tc>, window_params = [{transform_indices = @transform_0, window_bounds = array<i64: 1, 24, 256>}, {pipeline_mode = #tpu.pipeline_mode<synchronous>, transform_indices = @transform_1, window_bounds = array<i64: 24, 4>}, {transform_indices = @transform_2, window_bounds = array<i64: 1, 24, 256>}]} {
    %c0 = arith.constant 0 : index
    %c0_0 = arith.constant 0 : index
    %c0_1 = arith.constant 0 : index
    %0 = vector.load %arg2[%c0, %c0_0, %c0_1] : memref<1x24x256xf32, #tpu.memory_space<vmem>>, vector<1x24x256xf32>
    %1 = vector.shape_cast %0 : vector<1x24x256xf32> to vector<24x256xf32>
    %c0_2 = arith.constant 0 : index
    %c0_3 = arith.constant 0 : index
    %2 = vector.load %arg3[%c0_2, %c0_3] : memref<24x4xf32, #tpu.memory_space<vmem>>, vector<24x4xf32>
    %3 = vector.extract_strided_slice %2 {offsets = [0, 0], sizes = [24, 1], strides = [1, 1]} : vector<24x4xf32> to vector<24x1xf32>
    %cst = arith.constant 5.000000e-01 : f32
    %4 = vector.broadcast %cst : f32 to vector<24x1xf32>
    %5 = arith.cmpf ogt, %3, %4 : vector<24x1xf32>
    %6 = vector.extract_strided_slice %2 {offsets = [0, 1], sizes = [24, 1], strides = [1, 1]} : vector<24x4xf32> to vector<24x1xf32>
    %7 = vector.extract_strided_slice %2 {offsets = [0, 2], sizes = [24, 1], strides = [1, 1]} : vector<24x4xf32> to vector<24x1xf32>
    %8 = vector.extract_strided_slice %2 {offsets = [0, 3], sizes = [24, 1], strides = [1, 1]} : vector<24x4xf32> to vector<24x1xf32>
    %9 = tpu.iota {dimensions = array<i32: 1>} : vector<1x256xi32>
    %c256_i32 = arith.constant 256 : i32
    %10 = arith.muli %arg1, %c256_i32 : i32
    %11 = vector.broadcast %10 : i32 to vector<1x256xi32>
    %12 = arith.addi %9, %11 : vector<1x256xi32>
    %13 = arith.sitofp %12 : vector<1x256xi32> to vector<1x256xf32>
    %cst_4 = arith.constant 6.250000e-02 : f32
    %14 = vector.broadcast %cst_4 : f32 to vector<1x256xf32>
    %15 = arith.mulf %13, %14 : vector<1x256xf32>
    %16 = math.floor %15 : vector<1x256xf32>
    %cst_5 = arith.constant 1.600000e+01 : f32
    %17 = vector.broadcast %cst_5 : f32 to vector<1x256xf32>
    %18 = arith.mulf %16, %17 : vector<1x256xf32>
    %19 = arith.subf %13, %18 : vector<1x256xf32>
    %cst_6 = arith.constant 0.000000e+00 : f32
    %20 = vector.broadcast %cst_6 : f32 to vector<1x256xf32>
    %21 = arith.cmpf olt, %19, %20 : vector<1x256xf32>
    %cst_7 = arith.constant 1.000000e+00 : f32
    %22 = vector.broadcast %cst_7 : f32 to vector<1x256xf32>
    %23 = arith.subf %16, %22 : vector<1x256xf32>
    %24 = arith.select %21, %23, %16 : vector<1x256xi1>, vector<1x256xf32>
    %cst_8 = arith.constant 1.600000e+01 : f32
    %25 = vector.broadcast %cst_8 : f32 to vector<1x256xf32>
    %26 = arith.cmpf oge, %19, %25 : vector<1x256xf32>
    %cst_9 = arith.constant 1.000000e+00 : f32
    %27 = vector.broadcast %cst_9 : f32 to vector<1x256xf32>
    %28 = arith.addf %24, %27 : vector<1x256xf32>
    %29 = arith.select %26, %28, %24 : vector<1x256xi1>, vector<1x256xf32>
    %cst_10 = arith.constant 1.600000e+01 : f32
    %30 = vector.broadcast %cst_10 : f32 to vector<1x256xf32>
    %31 = arith.mulf %29, %30 : vector<1x256xf32>
    %32 = arith.subf %13, %31 : vector<1x256xf32>
    %33 = arith.negf %1 : vector<24x256xf32>
    %34 = math.exp %33 : vector<24x256xf32>
    %cst_11 = arith.constant 1.000000e+00 : f32
    %35 = vector.broadcast %cst_11 : f32 to vector<24x256xf32>
    %36 = arith.addf %35, %34 : vector<24x256xf32>
    %37 = arith.divf %35, %36 : vector<24x256xf32>
    %38 = math.exp %1 : vector<24x256xf32>
    %39 = vector.shape_cast %5 : vector<24x1xi1> to vector<24x1xi1>
    %40 = vector.broadcast %39 : vector<24x1xi1> to vector<24x256xi1>
    %41 = arith.select %40, %38, %37 : vector<24x256xi1>, vector<24x256xf32>
    %42 = vector.broadcast %6 : vector<24x1xf32> to vector<24x256xf32>
    %43 = vector.broadcast %32 : vector<1x256xf32> to vector<24x256xf32>
    %44 = arith.mulf %42, %43 : vector<24x256xf32>
    %45 = arith.addf %41, %44 : vector<24x256xf32>
    %46 = vector.broadcast %7 : vector<24x1xf32> to vector<24x256xf32>
    %47 = vector.broadcast %29 : vector<1x256xf32> to vector<24x256xf32>
    %48 = arith.mulf %46, %47 : vector<24x256xf32>
    %49 = arith.addf %45, %48 : vector<24x256xf32>
    %50 = vector.broadcast %8 : vector<24x1xf32> to vector<24x256xf32>
    %51 = arith.mulf %49, %50 : vector<24x256xf32>
    %c0_12 = arith.constant 0 : index
    %c0_13 = arith.constant 0 : index
    %c0_14 = arith.constant 0 : index
    %52 = vector.load %arg4[%c0_12, %c0_13, %c0_14] : memref<1x24x256xf32, #tpu.memory_space<vmem>>, vector<1x24x256xf32>
    %53 = vector.shape_cast %52 : vector<1x24x256xf32> to vector<24x256xf32>
    %54 = vector.shape_cast %51 : vector<24x256xf32> to vector<1x24x256xf32>
    tpu.vector_store %arg4[%c0_12, %c0_13, %c0_14], %54 {strides = array<i32>} : memref<1x24x256xf32, #tpu.memory_space<vmem>>, vector<1x24x256xf32>,
    return
  }
  func.func @transform_0(%arg0: i32, %arg1: i32) -> (i32, i32, i32) {
    %c0_i32 = arith.constant 0 : i32
    %c0_i32_0 = arith.constant 0 : i32
    return %arg0, %c0_i32, %arg1 : i32, i32, i32
  }
  func.func @transform_1(%arg0: i32, %arg1: i32) -> (i32, i32) {
    %c0_i32 = arith.constant 0 : i32
    %c0_i32_0 = arith.constant 0 : i32
    %c0_i32_1 = arith.constant 0 : i32
    return %c0_i32, %c0_i32_0 : i32, i32
  }
  func.func @transform_2(%arg0: i32, %arg1: i32) -> (i32, i32, i32) {
    %c0_i32 = arith.constant 0 : i32
    %c0_i32_0 = arith.constant 0 : i32
    return %arg0, %c0_i32, %arg1 : i32, i32, i32
  }
}

</mosaic_0001>

<llo_original>
// kernel: tpu_custom_call.1
$region0: #{tpu_custom_call.1}
  #allocation0 [shape = 'u32[]', space=smem, size = 0x4, offset = 0x4, fixed_abs, tag = 'smem constant byte address 0x4 - core index']
  #allocation1 [shape = 'u32[144,128]{1,0:T(1,128)}', space=vmem, size = 0x12000, scoped, tag = 'internal scratch']
  %s0 = inlined_call_operand.hbm [shape: f32[2,24,256], index: 0, kind: input, shape index: {}]
  %s1 = inlined_call_operand.vmem [shape: f32[24,4], index: 1, kind: input, shape index: {}]
  %s2 = inlined_call_operand.hbm [shape: f32[2,24,256], index: 2, kind: output, shape index: {}]
  %s3 = sld [smem:[#allocation0]]
  $region45: #{tpu_custom_call.1} parent=0
    _
  %s5 = ssub.s32 1, %s3
  %s6 = scalar_select 0, %s5, %s3
  $region1: #{tpu_custom_call.1} parent=0
    #allocation2 [shape = 'u8[49152]{0}', space=vmem, size = 0xc000, scoped, tag = 'input window, operand 0']
    #allocation3 [shape = 's32[2]{0}', space=sflag, size = 0x8, scoped, tag = 'scoped memory for tpu_custom_call.1']
    #allocation4 [shape = 's32[2]{0}', space=sflag, size = 0x8, scoped, tag = 'scoped memory for tpu_custom_call.1']
    #allocation5 [shape = 'u8[49152]{0}', space=vmem, size = 0xc000, scoped, tag = 'output window, operand 0']
    %7 = vsyncpa [#allocation3], 0
    %s8 = scalar_lea.sflag [#allocation3], 1
    %9 = vsyncpa %s8, 0
    %10 = vsyncpa [#allocation4], 0
    %s11 = scalar_lea.sflag [#allocation4], 1
    %12 = vsyncpa %s11, 0
    loop: start=0, step=1, limit=4
    $region2: #{tpu_custom_call.1} parent=1 // loop_pre_header
      _
    $region3: #{tpu_custom_call.1} parent=1 // loop_header
      %s14 = sphi 0, %s18
      %p15 = scmp.ge.s32.totalorder %s14, 4
      %s21 = sphi 0, %s33
      %s22 = sphi 0, %s29
      %s23 = sphi 0, %s21
      %s24 = sphi 0, %s22
      %s25 = sphi 0, %s23
      %s26 = sphi 0, %s24
      %s38 = sphi 0, %s40
      %s41 = sphi 0, %s38
      %s42 = sphi 0, %s41
      %s58 = sphi 0, %s42
      %s62 = sphi 0, %s62
      %s64 = sphi 0, %s62
      %s65 = sphi 0, %s64
      %s79 = sphi 0, %s65
      %s87 = sphi 0, %s89
      %s90 = sphi 0, %s87
      %s91 = sphi 0, %s90
      %s107 = sphi 0, %s91
    $region4: #{tpu_custom_call.1} parent=1 // loop_header_branch
      %17 = sbr.rel (%p15) target = $region8
    $region5: #{tpu_custom_call.1} parent=1 // loop_body
      %s19 = ssub.s32 %s14, 1
      %s20 = ssub.s32 %s14, 2
      %s27 = sadd.s32 1, %s22
      %p28 = scmp.ge.s32.totalorder %s27, 1
      %s29 = scalar_select %p28, 0, %s27
      %s30 = sadd.s32 1, %s21
      %s31 = scalar_select %p28, %s30, %s21
      %p32 = scmp.ge.s32.totalorder %s31, 2
      %s33 = scalar_select %p32, 0, %s31
      %s34 = ssub.s32 %s21, %s33
      %s35 = ssub.s32 %s22, %s29
      %s36 = sor.u32 %s34, %s35
      %p37 = scmp.eq.s32.totalorder %s36, 0
      %s39 = sadd.s32 %s38, 1
      %s40 = scalar_select %p37, %s38, %s39
      %p43 = pneg %p37
      %p44 = scmp.eq.s32.totalorder %s14, 1
      %p45 = por %p43, %p44
      %p46 = scmp.ne.s32.totalorder %s38, %s41
      %p47 = scmp.eq.s32.totalorder %s14, 0
      %p48 = por %p46, %p47
      %p49 = scmp.ne.s32.totalorder %s38, %s41
      %p50 = scmp.eq.s32.totalorder %s19, 1
      %p51 = por %p49, %p50
      %p52 = scmp.ne.s32.totalorder %s41, %s42
      %p53 = scmp.eq.s32.totalorder %s19, 0
      %p54 = por %p52, %p53
      %p55 = scmp.ne.s32.totalorder %s41, %s42
      %p56 = scmp.eq.s32.totalorder %s20, 1
      %p57 = por %p55, %p56
      %p59 = scmp.ne.s32.totalorder %s42, %s58
      %p60 = scmp.eq.s32.totalorder %s20, 0
      %p61 = por %p59, %p60
      %s63 = sadd.s32 %s62, 1
      %p66 = scmp.eq.s32.totalorder %s14, 1
      %p67 = scmp.ne.s32.totalorder %s62, %s64
      %p68 = scmp.eq.s32.totalorder %s14, 0
      %p69 = por %p67, %p68
      %p70 = scmp.ne.s32.totalorder %s62, %s64
      %p71 = scmp.eq.s32.totalorder %s19, 1
      %p72 = por %p70, %p71
      %p73 = scmp.ne.s32.totalorder %s64, %s65
      %p74 = scmp.eq.s32.totalorder %s19, 0
      %p75 = por %p73, %p74
      %p76 = scmp.ne.s32.totalorder %s64, %s65
      %p77 = scmp.eq.s32.totalorder %s20, 1
      %p78 = por %p76, %p77
      %p80 = scmp.ne.s32.totalorder %s65, %s79
      %p81 = scmp.eq.s32.totalorder %s20, 0
      %p82 = por %p80, %p81
      %s83 = ssub.s32 %s21, %s33
      %s84 = ssub.s32 %s22, %s29
      %s85 = sor.u32 %s83, %s84
      %p86 = scmp.eq.s32.totalorder %s85, 0
      %s88 = sadd.s32 %s87, 1
      %s89 = scalar_select %p86, %s87, %s88
      %p92 = pneg %p86
      %p93 = scmp.eq.s32.totalorder %s14, 1
      %p94 = por %p92, %p93
      %p95 = scmp.ne.s32.totalorder %s87, %s90
      %p96 = scmp.eq.s32.totalorder %s14, 0
      %p97 = por %p95, %p96
      %p98 = scmp.ne.s32.totalorder %s87, %s90
      %p99 = scmp.eq.s32.totalorder %s19, 1
      %p100 = por %p98, %p99
      %p101 = scmp.ne.s32.totalorder %s90, %s91
      %p102 = scmp.eq.s32.totalorder %s19, 0
      %p103 = por %p101, %p102
      %p104 = scmp.ne.s32.totalorder %s90, %s91
      %p105 = scmp.eq.s32.totalorder %s20, 1
      %p106 = por %p104, %p105
      %p108 = scmp.ne.s32.totalorder %s91, %s107
      %p109 = scmp.eq.s32.totalorder %s20, 0
      %p110 = por %p108, %p109
      %p111 = scmp.le.s32.totalorder 1, %s14
      %p112 = scmp.lt.s32.totalorder %s14, 3
      %p113 = pnand %p111, %p112
      %p114 = pneg %p113
      // Predicated region
      $region9: #{tpu_custom_call.1} parent=5 // pred_check
        _
      $region10: #{tpu_custom_call.1} parent=5 // pred_check_branch
        %116 = sbr.rel (%p113) target = $region12
      $region11: #{tpu_custom_call.1} parent=5 // pred_region
        %s117 = ssub.s32 %s14, 1
        // Predicated region
        $region13: #{tpu_custom_call.1} parent=11 // pred_check
          %p118 = pneg %p75
        $region14: #{tpu_custom_call.1} parent=11 // pred_check_branch
          %120 = sbr.rel (%p118) target = $region16
        $region15: #{tpu_custom_call.1} parent=11 // pred_region
          _
        $region16: #{tpu_custom_call.1} parent=11 // pred_fallthru
          _
      $region12: #{tpu_custom_call.1} parent=5 // pred_fallthru
        _
      %p121 = scmp.lt.s32.totalorder %s14, 2
      // Predicated region
      $region17: #{tpu_custom_call.1} parent=5 // pred_check
        %p122 = pneg %p121
      $region18: #{tpu_custom_call.1} parent=5 // pred_check_branch
        %124 = sbr.rel (%p122) target = $region20
      $region19: #{tpu_custom_call.1} parent=5 // pred_region
        // Predicated region
        $region21: #{tpu_custom_call.1} parent=19 // pred_check
          %p125 = pneg %p48
        $region22: #{tpu_custom_call.1} parent=19 // pred_check_branch
          %127 = sbr.rel (%p125) target = $region24
        $region23: #{tpu_custom_call.1} parent=19 // pred_region
          %s128 = sand.u32 %s38, 1
          %s129 = scalar_lea.sflag [#allocation3], %s128
          %s130 = sand.u32 %s38, 1
          %s131 = smul.addr %s130, 48
          %s132 = scalar_lea.vmem [#allocation2], %s131
          %s133 = smul.u32 2, %s22
          %s135 = ssub.s32 768, 768
          %136 = vsyncadd %s129, %s135
          %s137 = smul.addr %s21, 6
          %s138 = sadd.s32 %s133, %s137
          %s139 = smul.addr %s138, 128
          %s140 = scalar_lea.hbm %s0, %s139
          %s141 = sshll.u32 %s132, 4
          %s142 = int_to_ptr.vmem [resolvable:$true] %s141
          %147 = dma.hbm_to_vmem [thread:$0]  %s140, 768, %s142, %s129, 256, 256, 16
        $region24: #{tpu_custom_call.1} parent=19 // pred_fallthru
          _
      $region20: #{tpu_custom_call.1} parent=5 // pred_fallthru
        _
      %p148 = scmp.le.s32.totalorder 1, %s14
      %p149 = scmp.lt.s32.totalorder %s14, 3
      %p150 = pnand %p148, %p149
      %p151 = pneg %p150
      // Predicated region
      $region25: #{tpu_custom_call.1} parent=5 // pred_check
        _
      $region26: #{tpu_custom_call.1} parent=5 // pred_check_branch
        %153 = sbr.rel (%p150) target = $region28
      $region27: #{tpu_custom_call.1} parent=5 // pred_region
        %s154 = ssub.s32 %s14, 1
        %s155 = sand.u32 %s41, 1
        %s156 = scalar_lea.sflag [#allocation3], %s155
        %s157 = sand.u32 %s41, 1
        %s158 = smul.addr %s157, 48
        %s159 = scalar_lea.vmem [#allocation2], %s158
        // Predicated region
        $region29: #{tpu_custom_call.1} parent=27 // pred_check
          %p160 = pneg %p54
        $region30: #{tpu_custom_call.1} parent=27 // pred_check_branch
          %162 = sbr.rel (%p160) target = $region32
        $region31: #{tpu_custom_call.1} parent=27 // pred_region
          %163 = dma.done %s156, 768
        $region32: #{tpu_custom_call.1} parent=27 // pred_fallthru
          _
        %s164 = sand.u32 %s41, 1
        %s165 = scalar_lea.sflag [#allocation3], %s164
        %s166 = sand.u32 %s41, 1
        %s167 = smul.addr %s166, 48
        %s168 = scalar_lea.vmem [#allocation2], %s167
        %p169 = pneg %p54
        %p170 = pneg %p51
        %p171 = pneg %p75
        %p172 = pneg %p72
        %p173 = pneg %p103
        %p174 = pneg %p100
        %s175 = sand.u32 %s90, 1
        %s176 = scalar_lea.sflag [#allocation4], %s175
        %s177 = sand.u32 %s90, 1
        %s178 = smul.addr %s177, 48
        %s179 = scalar_lea.vmem [#allocation5], %s178
        %s180 = smul.u32 2, %s24
        %s181 = smul.u32 2, %s24
        %v182 = vld [vmem:[%s159] sm:$0xff]
        %v183 = vld [vmem:[%s159 + $0x8] sm:$0xff]
        %v184 = vld [vmem:[%s159 + $0x10] sm:$0xff]
        %v185 = vld [vmem:[%s159 + $0x18] sm:$0xff]
        %v186 = vld [vmem:[%s159 + $0x20] sm:$0xff]
        %v187 = vld [vmem:[%s159 + $0x28] sm:$0xff]
        %v188 = vld [vmem:[%s1] sm:$0xff]
        %v189 = vld [vmem:[%s1 + $0x8] sm:$0xff]
        %v190 = vld [vmem:[%s1 + $0x10] sm:$0xff]
        %vm191 = vcmp.gt.f32.partialorder %v188, 0.5
        %vm192 = vcmp.gt.f32.partialorder %v189, 0.5
        %vm193 = vcmp.gt.f32.partialorder %v190, 0.5
        %v194 = vlaneseq
        %v195 = vand.u32 %v194, 127
        %v196 = vadd.s32 %v195, 128
        %s197 = smul.u32 %s24, 256
        %v198 = vstv %s197
        %v199 = vadd.s32 %v195, %v198
        %v200 = vadd.s32 %v196, %v198
        %v201 = vcvt.s32.f32 %v199
        %v202 = vcvt.s32.f32 %v200
        %v203 = vmul.f32 %v201, 0.0625
        %v204 = vmul.f32 %v202, 0.0625
        %v205 = vfloor.f32 %v203
        %v206 = vfloor.f32 %v204
        %v207 = vmul.f32 %v205, 16.0
        %v208 = vmul.f32 %v206, 16.0
        %v209 = vsub.f32 %v201, %v207
        %v210 = vsub.f32 %v202, %v208
        %vm211 = vcmp.lt.f32.partialorder %v209, 0.0
        %vm212 = vcmp.lt.f32.partialorder %v210, 0.0
        %v213 = vsub.f32 %v205, 1.0
        %v214 = vsub.f32 %v206, 1.0
        %v215 = vsel %vm211, %v213, %v205
        %v216 = vsel %vm212, %v214, %v206
        %vm217 = vcmp.ge.f32.partialorder %v209, 16.0
        %vm218 = vcmp.ge.f32.partialorder %v210, 16.0
        %v219 = vadd.f32 %v215, 1.0
        %v220 = vadd.f32 %v216, 1.0
        %v221 = vsel %vm217, %v219, %v215
        %v222 = vsel %vm218, %v220, %v216
        %v223 = vmul.f32 %v221, 16.0
        %v224 = vmul.f32 %v222, 16.0
        %v225 = vsub.f32 %v201, %v223
        %v226 = vsub.f32 %v202, %v224
        %v227 = vxor.u32 %v182, 2147483648
        %v228 = vxor.u32 %v183, 2147483648
        %v229 = vxor.u32 %v184, 2147483648
        %v230 = vxor.u32 %v185, 2147483648
        %v231 = vxor.u32 %v186, 2147483648
        %v232 = vxor.u32 %v187, 2147483648
        %v233 = vmul.f32 %v227, 1.442695
        %v234 = vpow.pop %v233
        %v235 = vmul.f32 %v228, 1.442695
        %v236 = vpow.pop %v235
        %v237 = vmul.f32 %v229, 1.442695
        %v238 = vpow.pop %v237
        %v239 = vmul.f32 %v230, 1.442695
        %v240 = vpow.pop %v239
        %v241 = vmul.f32 %v231, 1.442695
        %v242 = vpow.pop %v241
        %v243 = vmul.f32 %v232, 1.442695
        %v244 = vpow.pop %v243
        %v245 = vadd.f32 %v234, 1.0
        %v246 = vadd.f32 %v236, 1.0
        %v247 = vadd.f32 %v238, 1.0
        %v248 = vadd.f32 %v240, 1.0
        %v249 = vadd.f32 %v242, 1.0
        %v250 = vadd.f32 %v244, 1.0
        %v251 = vrcp.pop %v245
        %v252 = vmul.f32 1.0, %v251
        %v253 = vrcp.pop %v246
        %v254 = vmul.f32 1.0, %v253
        %v255 = vrcp.pop %v247
        %v256 = vmul.f32 1.0, %v255
        %v257 = vrcp.pop %v248
        %v258 = vmul.f32 1.0, %v257
        %v259 = vrcp.pop %v249
        %v260 = vmul.f32 1.0, %v259
        %v261 = vrcp.pop %v250
        %v262 = vmul.f32 1.0, %v261
        %v263 = vmul.f32 %v182, 1.442695
        %v264 = vpow.pop %v263
        %v265 = vmul.f32 %v183, 1.442695
        %v266 = vpow.pop %v265
        %v267 = vmul.f32 %v184, 1.442695
        %v268 = vpow.pop %v267
        %v269 = vmul.f32 %v185, 1.442695
        %v270 = vpow.pop %v269
        %v271 = vmul.f32 %v186, 1.442695
        %v272 = vpow.pop %v271
        %v273 = vmul.f32 %v187, 1.442695
        %v274 = vpow.pop %v273
        %v275 = vsel %vm191, 1, 0
        %v276 = vsel %vm192, 1, 0
        %v277 = vsel %vm193, 1, 0
        %278 = vset.pattern.permute.xlu0 0
        %279 = vperm.xlu0 %278, %v275
        %v280 = vpop.permute.xlu0 %279
        %281 = vset.pattern.permute.xlu0 0
        %282 = vperm.xlu0 %281, %v276
        %v283 = vpop.permute.xlu0 %282
        %284 = vset.pattern.permute.xlu0 0
        %285 = vperm.xlu0 %284, %v277
        %v286 = vpop.permute.xlu0 %285
        %vm287 = vcmp.eq.s32.totalorder %v280, 1
        %vm288 = vcmp.eq.s32.totalorder %v283, 1
        %vm289 = vcmp.eq.s32.totalorder %v286, 1
        %v290 = vsel %vm287, %v264, %v252
        %v291 = vsel %vm287, %v266, %v254
        %v292 = vsel %vm288, %v268, %v256
        %v293 = vsel %vm288, %v270, %v258
        %v294 = vsel %vm289, %v272, %v260
        %v295 = vsel %vm289, %v274, %v262
        %297 = vset.pattern.permute.xlu0 1
        %298 = vperm.xlu0 %297, %v188
        %v299 = vpop.permute.xlu0 %298
        %302 = vset.pattern.permute.xlu0 1
        %303 = vperm.xlu0 %302, %v189
        %v304 = vpop.permute.xlu0 %303
        %307 = vset.pattern.permute.xlu0 1
        %308 = vperm.xlu0 %307, %v190
        %v309 = vpop.permute.xlu0 %308
        %v311 = vmul.f32 %v299, %v225
        %v312 = vmul.f32 %v299, %v226
        %v313 = vmul.f32 %v304, %v225
        %v314 = vmul.f32 %v304, %v226
        %v315 = vmul.f32 %v309, %v225
        %v316 = vmul.f32 %v309, %v226
        %v317 = vadd.f32 %v290, %v311
        %v318 = vadd.f32 %v291, %v312
        %v319 = vadd.f32 %v292, %v313
        %v320 = vadd.f32 %v293, %v314
        %v321 = vadd.f32 %v294, %v315
        %v322 = vadd.f32 %v295, %v316
        %323 = vset.pattern.permute.xlu0 2
        %324 = vperm.xlu0 %323, %v188
        %v325 = vpop.permute.xlu0 %324
        %327 = vset.pattern.permute.xlu0 2
        %328 = vperm.xlu0 %327, %v189
        %v329 = vpop.permute.xlu0 %328
        %331 = vset.pattern.permute.xlu0 2
        %332 = vperm.xlu0 %331, %v190
        %v333 = vpop.permute.xlu0 %332
        %v335 = vmul.f32 %v325, %v221
        %v336 = vmul.f32 %v325, %v222
        %v337 = vmul.f32 %v329, %v221
        %v338 = vmul.f32 %v329, %v222
        %v339 = vmul.f32 %v333, %v221
        %v340 = vmul.f32 %v333, %v222
        %v341 = vadd.f32 %v317, %v335
        %v342 = vadd.f32 %v318, %v336
        %v343 = vadd.f32 %v319, %v337
        %v344 = vadd.f32 %v320, %v338
        %v345 = vadd.f32 %v321, %v339
        %v346 = vadd.f32 %v322, %v340
        %347 = vset.pattern.permute.xlu0 3
        %348 = vperm.xlu0 %347, %v188
        %v349 = vpop.permute.xlu0 %348
        %351 = vset.pattern.permute.xlu0 3
        %352 = vperm.xlu0 %351, %v189
        %v353 = vpop.permute.xlu0 %352
        %355 = vset.pattern.permute.xlu0 3
        %356 = vperm.xlu0 %355, %v190
        %v357 = vpop.permute.xlu0 %356
        %v359 = vmul.f32 %v341, %v349
        %v360 = vmul.f32 %v342, %v349
        %v361 = vmul.f32 %v343, %v353
        %v362 = vmul.f32 %v344, %v353
        %v363 = vmul.f32 %v345, %v357
        %v364 = vmul.f32 %v346, %v357
        %365 = vst [vmem:[%s179] sm:$0xff] %v359
        %366 = vst [vmem:[%s179 + $0x8] sm:$0xff] %v360
        %367 = vst [vmem:[%s179 + $0x10] sm:$0xff] %v361
        %368 = vst [vmem:[%s179 + $0x18] sm:$0xff] %v362
        %369 = vst [vmem:[%s179 + $0x20] sm:$0xff] %v363
        %370 = vst [vmem:[%s179 + $0x28] sm:$0xff] %v364
        %s371 = sand.u32 %s90, 1
        %s372 = scalar_lea.sflag [#allocation4], %s371
        %s373 = sand.u32 %s90, 1
        %s374 = smul.addr %s373, 48
        %s375 = scalar_lea.vmem [#allocation5], %s374
        // Predicated region
        $region33: #{tpu_custom_call.1} parent=27 // pred_check
          %p376 = pneg %p100
        $region34: #{tpu_custom_call.1} parent=27 // pred_check_branch
          %378 = sbr.rel (%p376) target = $region36
        $region35: #{tpu_custom_call.1} parent=27 // pred_region
          %s379 = smul.u32 2, %s24
          %s381 = ssub.s32 768, 768
          %382 = vsyncadd %s372, %s381
          %s383 = smul.addr %s23, 6
          %s384 = sadd.s32 %s379, %s383
          %s385 = smul.addr %s384, 128
          %s386 = scalar_lea.hbm %s2, %s385
          %s387 = sshll.u32 %s375, 4
          %s388 = int_to_ptr.vmem [resolvable:$true] %s387
          %393 = dma.vmem_to_hbm [thread:$0]  %s388, 768, %s386, %s372, 256, 256, 16
        $region36: #{tpu_custom_call.1} parent=27 // pred_fallthru
          _
      $region28: #{tpu_custom_call.1} parent=5 // pred_fallthru
        _
      %p394 = scmp.le.s32.totalorder 2, %s14
      // Predicated region
      $region37: #{tpu_custom_call.1} parent=5 // pred_check
        %p395 = pneg %p394
      $region38: #{tpu_custom_call.1} parent=5 // pred_check_branch
        %397 = sbr.rel (%p395) target = $region40
      $region39: #{tpu_custom_call.1} parent=5 // pred_region
        %s398 = ssub.s32 %s14, 2
        // Predicated region
        $region41: #{tpu_custom_call.1} parent=39 // pred_check
          %p399 = pneg %p106
        $region42: #{tpu_custom_call.1} parent=39 // pred_check_branch
          %401 = sbr.rel (%p399) target = $region44
        $region43: #{tpu_custom_call.1} parent=39 // pred_region
          %s402 = sand.u32 %s91, 1
          %s403 = scalar_lea.sflag [#allocation4], %s402
          %s404 = sand.u32 %s91, 1
          %s405 = smul.addr %s404, 48
          %s406 = scalar_lea.vmem [#allocation5], %s405
          %407 = dma.done %s403, 768
        $region44: #{tpu_custom_call.1} parent=39 // pred_fallthru
          _
      $region40: #{tpu_custom_call.1} parent=5 // pred_fallthru
        _
    $region6: #{tpu_custom_call.1} parent=1 // loop_footer
      %s18 = sadd.s32 1, %s14
    $region7: #{tpu_custom_call.1} parent=1 // loop_footer_branch
      %13 = sbr.rel target = $region3
    $region8: #{tpu_custom_call.1} parent=1 // loop_exit
      _
    %408 = vsyncpa [#allocation3], 1
    %s409 = scalar_lea.sflag [#allocation3], 1
    %410 = vsyncpa %s409, 1
    %411 = vsyncpa [#allocation4], 1
    %s412 = scalar_lea.sflag [#allocation4], 1
    %413 = vsyncpa %s412, 1

</llo_original>
